<compile_context>
chip_gen: v6e
topology: v6e:2x2x1
jax: 0.10.0
libtpu: 0.0.40
codegen_flags: <defaults>
</compile_context>

<pallas_src>
import math

import jax
import jax.numpy as jnp
from jax.experimental import pallas as pl
from jax.experimental.pallas import tpu as pltpu


def _make_cross_attention_kernel(num_heads: int, head_dim: int):
    scale = 1.0 / math.sqrt(head_dim)

    def kernel(hs_ref, enc_ref, bias_ref, wq_ref, wk_ref, ctx_ref, scores_ref):
        hs_f32 = hs_ref[0]                        # (Sq, D) f32 — kept for residual
        hs_bf = hs_f32.astype(jnp.bfloat16)       # MXU operand
        enc_bf = enc_ref[0]                       # (Sk, D) bf16 — k-proj input and v
        bias = bias_ref[0]                        # (1, Sk) f32 additive mask (0 / -inf)

        # Full projections on the MXU: bf16 operands, f32 accumulation.
        q = jnp.dot(hs_bf, wq_ref[...], preferred_element_type=jnp.float32)   # (Sq, D)
        k = jnp.dot(enc_bf, wk_ref[...], preferred_element_type=jnp.float32)  # (Sk, D)

        # Fold 1/sqrt(head_dim) into q (cheaper than scaling (H, Sq, Sk)).
        q_bf = (q * scale).astype(jnp.bfloat16)
        k_bf = k.astype(jnp.bfloat16)

        ctx_heads = []
        for h in range(num_heads):                # static unroll → static lane offsets
            lo = h * head_dim
            q_h = q_bf[:, lo:lo + head_dim]       # (Sq, hd) bf16
            k_h = k_bf[:, lo:lo + head_dim]       # (Sk, hd) bf16
            v_h = enc_bf[:, lo:lo + head_dim]     # (Sk, hd) bf16 (v = encoder states)

            # scores_h = (q_h * scale) @ k_h^T + mask_bias   (f32 accumulate)
            s_h = jax.lax.dot_general(
                q_h, k_h, (((1,), (1,)), ((), ())),
                preferred_element_type=jnp.float32) + bias     # (Sq, Sk)
            scores_ref[0, h] = s_h                # masked pre-softmax scores output

            # Softmax over keys in f32; divide → EUP reciprocal.
            m = jnp.max(s_h, axis=-1, keepdims=True)
            e = jnp.exp(s_h - m)
            denom = jnp.sum(e, axis=-1, keepdims=True)
            p = e * pl.reciprocal(denom, approx=True)

            ctx_heads.append(
                jnp.dot(p.astype(jnp.bfloat16), v_h,
                        preferred_element_type=jnp.float32))   # (Sq, hd)

        ctx = jnp.concatenate(ctx_heads, axis=-1)               # (Sq, D) merge heads
        ctx_ref[0] = ctx + hs_f32                               # residual add

    return kernel


def cross_attention(hidden_states, encoder_hidden_states, encoder_attention_mask,
                    wq, wk, *, num_heads):
    """hidden_states (B,Sq,D) f32, encoder_hidden_states (B,Sk,D) f32,
    encoder_attention_mask (B,Sk) with exact 1.0/0.0, wq/wk (D,D) torch layout
    (out_features, in_features)."""
    B, Sq, D = hidden_states.shape
    Sk = encoder_hidden_states.shape[1]
    H = num_heads
    hd = D // H

    # nn.Linear(bias=False): y = x @ W^T — pass W^T, pre-cast to bf16
    # (halves weight DMA bytes and VMEM footprint).
    wq_t = wq.T.astype(jnp.bfloat16)
    wk_t = wk.T.astype(jnp.bfloat16)
    enc_bf = encoder_hidden_states.astype(jnp.bfloat16)

    # masked_fill(mask == 0, -inf) as an additive bias.  Note: float equality
    # against 0 is safe here only because the mask holds exact 0.0 / 1.0.
    bias = jnp.where(encoder_attention_mask == 0,
                     jnp.float32(-jnp.inf), jnp.float32(0.0))
    bias = bias.reshape(B, 1, Sk).astype(jnp.float32)

    kernel = _make_cross_attention_kernel(H, hd)

    out_shapes = (
        jax.ShapeDtypeStruct((B, Sq, D), jnp.float32),       # context + residual
        jax.ShapeDtypeStruct((B, H, Sq, Sk), jnp.float32),   # masked scores
    )

    grid_spec = pltpu.PrefetchScalarGridSpec(
        num_scalar_prefetch=0,
        grid=(B,),
        in_specs=[
            pl.BlockSpec((1, Sq, D), lambda b: (b, 0, 0)),   # hidden_states (f32)
            pl.BlockSpec((1, Sk, D), lambda b: (b, 0, 0)),   # encoder states (bf16)
            pl.BlockSpec((1, 1, Sk), lambda b: (b, 0, 0)),   # additive mask bias
            pl.BlockSpec((D, D), lambda b: (0, 0)),          # Wq^T (grid-invariant)
            pl.BlockSpec((D, D), lambda b: (0, 0)),          # Wk^T (grid-invariant)
        ],
        out_specs=[
            pl.BlockSpec((1, Sq, D), lambda b: (b, 0, 0)),
            pl.BlockSpec((1, H, Sq, Sk), lambda b: (b, 0, 0, 0)),
        ],
    )

    return pl.pallas_call(
        kernel,
        out_shape=out_shapes,
        grid_spec=grid_spec,
        compiler_params=pltpu.CompilerParams(
            dimension_semantics=("parallel",),               # shard batch over TCs
            vmem_limit_bytes=32 * 1024 * 1024),
    )(hidden_states, enc_bf, bias, wq_t, wk_t)


def cross_attention_ref(hidden_states, encoder_hidden_states, encoder_attention_mask,
                        wq, wk, *, num_heads, mxu_dtype=jnp.float32):
    """Pure-JAX reference mirroring the torch forward.  With mxu_dtype=bfloat16
    the matmul operands are cast the same way as the kernel's MXU operands, so
    the comparison can be tight; with float32 it is the exact torch math."""
    B, Sq, D = hidden_states.shape
    Sk = encoder_hidden_states.shape[1]
    H = num_heads
    hd = D // H
    scale = 1.0 / math.sqrt(hd)
    c = lambda x: x.astype(mxu_dtype)

    q = jnp.einsum("bsd,de->bse", c(hidden_states), c(wq.T),
                   preferred_element_type=jnp.float32)
    k = jnp.einsum("bsd,de->bse", c(encoder_hidden_states), c(wk.T),
                   preferred_element_type=jnp.float32)

    def shape(x):
        return x.reshape(B, -1, H, hd).transpose(0, 2, 1, 3)

    qh = shape(q * scale)
    kh = shape(k)
    vh = shape(encoder_hidden_states.astype(jnp.float32))

    scores = jnp.einsum("bhqd,bhkd->bhqk", c(qh), c(kh),
                        preferred_element_type=jnp.float32)
    scores = jnp.where(encoder_attention_mask[:, None, None, :] == 0,
                       jnp.float32(-jnp.inf), scores)
    probs = jax.nn.softmax(scores, axis=-1)
    ctx = jnp.einsum("bhqk,bhkd->bhqd", c(probs), c(vh),
                     preferred_element_type=jnp.float32)
    ctx = ctx.transpose(0, 2, 1, 3).reshape(B, Sq, D)
    return ctx + hidden_states, scores


if __name__ == "__main__":
    # Small config consistent with the module: hidden=32, heads=4 -> head_dim=8.
    B, Sq, Sk, D, H = 2, 8, 16, 32, 4

    key = jax.random.PRNGKey(0)
    k1, k2, k3, k4 = jax.random.split(key, 4)

    hidden_states = jax.random.normal(k1, (B, Sq, D), dtype=jnp.float32)
    encoder_hidden_states = jax.random.normal(k2, (B, Sk, D), dtype=jnp.float32)
    # Deterministic Linear weights (torch layout: (out_features, in_features)).
    wq = jax.random.normal(k3, (D, D), dtype=jnp.float32) * (1.0 / math.sqrt(D))
    wk = jax.random.normal(k4, (D, D), dtype=jnp.float32) * (1.0 / math.sqrt(D))
    # Mask out the tail of the encoder sequence (1 = keep, 0 = mask);
    # every row keeps at least one key, so no NaN rows (same caveat as torch ref).
    enc_mask = jnp.concatenate(
        [jnp.ones((B, Sk - 4), jnp.float32), jnp.zeros((B, 4), jnp.float32)], axis=1)

    ctx, scores = cross_attention(
        hidden_states, encoder_hidden_states, enc_mask, wq, wk, num_heads=H)
    ctx = jax.block_until_ready(ctx)
    scores = jax.block_until_ready(scores)

    assert ctx.shape == (B, Sq, D) and scores.shape == (B, H, Sq, Sk)

    # Tight check vs. a reference that mirrors the kernel's bf16 MXU precision.
    ctx_bf, sc_bf = cross_attention_ref(
        hidden_states, encoder_hidden_states, enc_mask, wq, wk,
        num_heads=H, mxu_dtype=jnp.bfloat16)
    assert jnp.allclose(scores, sc_bf, atol=1e-2, rtol=1e-2)
    assert jnp.allclose(ctx, ctx_bf, atol=1e-2, rtol=1e-2)

    # Loose sanity check vs. exact-f32 torch semantics (differences are purely
    # bf16 operand rounding on the MXU + approx reciprocal).
    ctx_f32, sc_f32 = cross_attention_ref(
        hidden_states, encoder_hidden_states, enc_mask, wq, wk,
        num_heads=H, mxu_dtype=jnp.float32)
    assert jnp.allclose(scores, sc_f32, atol=2e-1, rtol=2e-1)
    assert jnp.allclose(ctx, ctx_f32, atol=2e-1, rtol=2e-1)

    print("KERNEL_OK")
</pallas_src>

<mosaic_0001>
module attributes {stable_mosaic.version = 11 : i64} {
  func.func @kernel(%arg0: i32, %arg1: memref<1x8x32xf32, #tpu.memory_space<vmem>>, %arg2: memref<1x16x32xbf16, #tpu.memory_space<vmem>>, %arg3: memref<1x1x16xf32, #tpu.memory_space<vmem>>, %arg4: memref<32x32xbf16, #tpu.memory_space<vmem>>, %arg5: memref<32x32xbf16, #tpu.memory_space<vmem>>, %arg6: memref<1x8x32xf32, #tpu.memory_space<vmem>>, %arg7: memref<1x4x8x16xf32, #tpu.memory_space<vmem>>) attributes {dimension_semantics = [#tpu.dimension_semantics<parallel>], iteration_bounds = array<i64: 2>, scalar_prefetch = 0 : i64, scratch_operands = 0 : i64, tpu.core_type = #tpu.core_type<tc>, window_params = [{transform_indices = @transform_0, window_bounds = array<i64: 1, 8, 32>}, {transform_indices = @transform_1, window_bounds = array<i64: 1, 16, 32>}, {transform_indices = @transform_2, window_bounds = array<i64: 1, 1, 16>}, {pipeline_mode = #tpu.pipeline_mode<synchronous>, transform_indices = @transform_3, window_bounds = array<i64: 32, 32>}, {pipeline_mode = #tpu.pipeline_mode<synchronous>, transform_indices = @transform_4, window_bounds = array<i64: 32, 32>}, {transform_indices = @transform_5, window_bounds = array<i64: 1, 8, 32>}, {transform_indices = @transform_6, window_bounds = array<i64: 1, 4, 8, 16>}]} {
    %c0 = arith.constant 0 : index
    %c0_0 = arith.constant 0 : index
    %c0_1 = arith.constant 0 : index
    %0 = vector.load %arg1[%c0, %c0_0, %c0_1] : memref<1x8x32xf32, #tpu.memory_space<vmem>>, vector<1x8x32xf32>
    %1 = vector.shape_cast %0 : vector<1x8x32xf32> to vector<8x32xf32>
    %2 = arith.truncf %1 : vector<8x32xf32> to vector<8x32xbf16>
    %c0_2 = arith.constant 0 : index
    %c0_3 = arith.constant 0 : index
    %c0_4 = arith.constant 0 : index
    %3 = vector.load %arg2[%c0_2, %c0_3, %c0_4] : memref<1x16x32xbf16, #tpu.memory_space<vmem>>, vector<1x16x32xbf16>
    %4 = vector.shape_cast %3 : vector<1x16x32xbf16> to vector<16x32xbf16>
    %c0_5 = arith.constant 0 : index
    %c0_6 = arith.constant 0 : index
    %c0_7 = arith.constant 0 : index
    %5 = vector.load %arg3[%c0_5, %c0_6, %c0_7] : memref<1x1x16xf32, #tpu.memory_space<vmem>>, vector<1x1x16xf32>
    %6 = vector.shape_cast %5 : vector<1x1x16xf32> to vector<1x16xf32>
    %c0_8 = arith.constant 0 : index
    %c0_9 = arith.constant 0 : index
    %7 = vector.load %arg4[%c0_8, %c0_9] : memref<32x32xbf16, #tpu.memory_space<vmem>>, vector<32x32xbf16>
    %cst = arith.constant dense<0.000000e+00> : vector<8x32xf32>
    %8 = tpu.matmul %2, %7, %cst {dimension_numbers = #tpu.dot_dimension_numbers<[1], [0], [0], [1], [0, 0, 1, 1], [], []>} : vector<8x32xbf16>, vector<32x32xbf16>, vector<8x32xf32> -> vector<8x32xf32>
    %c0_10 = arith.constant 0 : index
    %c0_11 = arith.constant 0 : index
    %9 = vector.load %arg5[%c0_10, %c0_11] : memref<32x32xbf16, #tpu.memory_space<vmem>>, vector<32x32xbf16>
    %cst_12 = arith.constant dense<0.000000e+00> : vector<16x32xf32>
    %10 = tpu.matmul %4, %9, %cst_12 {dimension_numbers = #tpu.dot_dimension_numbers<[1], [0], [0], [1], [0, 0, 1, 1], [], []>} : vector<16x32xbf16>, vector<32x32xbf16>, vector<16x32xf32> -> vector<16x32xf32>
    %cst_13 = arith.constant 0.353553385 : f32
    %11 = vector.broadcast %cst_13 : f32 to vector<8x32xf32>
    %12 = arith.mulf %8, %11 : vector<8x32xf32>
    %13 = arith.truncf %12 : vector<8x32xf32> to vector<8x32xbf16>
    %14 = arith.truncf %10 : vector<16x32xf32> to vector<16x32xbf16>
    %15 = vector.extract_strided_slice %13 {offsets = [0, 0], sizes = [8, 8], strides = [1, 1]} : vector<8x32xbf16> to vector<8x8xbf16>
    %16 = vector.extract_strided_slice %14 {offsets = [0, 0], sizes = [16, 8], strides = [1, 1]} : vector<16x32xbf16> to vector<16x8xbf16>
    %17 = vector.extract_strided_slice %4 {offsets = [0, 0], sizes = [16, 8], strides = [1, 1]} : vector<16x32xbf16> to vector<16x8xbf16>
    %cst_14 = arith.constant dense<0.000000e+00> : vector<8x16xf32>
    %18 = tpu.matmul %15, %16, %cst_14 {dimension_numbers = #tpu.dot_dimension_numbers<[1], [1], [0], [0], [0, 0, 1, 0], [], []>} : vector<8x8xbf16>, vector<16x8xbf16>, vector<8x16xf32> -> vector<8x16xf32>
    %19 = vector.broadcast %6 : vector<1x16xf32> to vector<8x16xf32>
    %20 = arith.addf %18, %19 : vector<8x16xf32>
    %c0_15 = arith.constant 0 : index
    %c0_16 = arith.constant 0 : index
    %c0_17 = arith.constant 0 : index
    %c0_18 = arith.constant 0 : index
    %21 = vector.load %arg7[%c0_15, %c0_16, %c0_17, %c0_18] : memref<1x4x8x16xf32, #tpu.memory_space<vmem>>, vector<1x1x8x16xf32>
    %22 = vector.shape_cast %21 : vector<1x1x8x16xf32> to vector<8x16xf32>
    %23 = vector.shape_cast %20 : vector<8x16xf32> to vector<1x1x8x16xf32>
    tpu.vector_store %arg7[%c0_15, %c0_16, %c0_17, %c0_18], %23 {strides = array<i32>} : memref<1x4x8x16xf32, #tpu.memory_space<vmem>>, vector<1x1x8x16xf32>,
    %cst_19 = arith.constant dense<0xFF800000> : vector<8xf32>
    %24 = vector.multi_reduction <maximumf>, %20, %cst_19 [1] : vector<8x16xf32> to vector<8xf32>
    %25 = vector.shape_cast %24 : vector<8xf32> to vector<8x1xf32>
    %26 = vector.broadcast %25 : vector<8x1xf32> to vector<8x16xf32>
    %27 = arith.subf %20, %26 : vector<8x16xf32>
    %28 = math.exp %27 : vector<8x16xf32>
    %cst_20 = arith.constant dense<0.000000e+00> : vector<8xf32>
    %29 = vector.multi_reduction <add>, %28, %cst_20 [1] : vector<8x16xf32> to vector<8xf32>
    %30 = vector.shape_cast %29 : vector<8xf32> to vector<8x1xf32>
    %31 = tpu.reciprocal %30 {approx = true} : vector<8x1xf32> -> vector<8x1xf32>
    %32 = vector.broadcast %31 : vector<8x1xf32> to vector<8x16xf32>
    %33 = arith.mulf %28, %32 : vector<8x16xf32>
    %34 = arith.truncf %33 : vector<8x16xf32> to vector<8x16xbf16>
    %cst_21 = arith.constant dense<0.000000e+00> : vector<8x8xf32>
    %35 = tpu.matmul %34, %17, %cst_21 {dimension_numbers = #tpu.dot_dimension_numbers<[1], [0], [0], [1], [0, 0, 1, 1], [], []>} : vector<8x16xbf16>, vector<16x8xbf16>, vector<8x8xf32> -> vector<8x8xf32>
    %36 = vector.extract_strided_slice %13 {offsets = [0, 8], sizes = [8, 8], strides = [1, 1]} : vector<8x32xbf16> to vector<8x8xbf16>
    %37 = vector.extract_strided_slice %14 {offsets = [0, 8], sizes = [16, 8], strides = [1, 1]} : vector<16x32xbf16> to vector<16x8xbf16>
    %38 = vector.extract_strided_slice %4 {offsets = [0, 8], sizes = [16, 8], strides = [1, 1]} : vector<16x32xbf16> to vector<16x8xbf16>
    %cst_22 = arith.constant dense<0.000000e+00> : vector<8x16xf32>
    %39 = tpu.matmul %36, %37, %cst_22 {dimension_numbers = #tpu.dot_dimension_numbers<[1], [1], [0], [0], [0, 0, 1, 0], [], []>} : vector<8x8xbf16>, vector<16x8xbf16>, vector<8x16xf32> -> vector<8x16xf32>
    %40 = vector.broadcast %6 : vector<1x16xf32> to vector<8x16xf32>
    %41 = arith.addf %39, %40 : vector<8x16xf32>
    %c0_23 = arith.constant 0 : index
    %c1 = arith.constant 1 : index
    %c0_24 = arith.constant 0 : index
    %c0_25 = arith.constant 0 : index
    %42 = vector.load %arg7[%c0_23, %c1, %c0_24, %c0_25] : memref<1x4x8x16xf32, #tpu.memory_space<vmem>>, vector<1x1x8x16xf32>
    %43 = vector.shape_cast %42 : vector<1x1x8x16xf32> to vector<8x16xf32>
    %44 = vector.shape_cast %41 : vector<8x16xf32> to vector<1x1x8x16xf32>
    tpu.vector_store %arg7[%c0_23, %c1, %c0_24, %c0_25], %44 {strides = array<i32>} : memref<1x4x8x16xf32, #tpu.memory_space<vmem>>, vector<1x1x8x16xf32>,
    %cst_26 = arith.constant dense<0xFF800000> : vector<8xf32>
    %45 = vector.multi_reduction <maximumf>, %41, %cst_26 [1] : vector<8x16xf32> to vector<8xf32>
    %46 = vector.shape_cast %45 : vector<8xf32> to vector<8x1xf32>
    %47 = vector.broadcast %46 : vector<8x1xf32> to vector<8x16xf32>
    %48 = arith.subf %41, %47 : vector<8x16xf32>
    %49 = math.exp %48 : vector<8x16xf32>
    %cst_27 = arith.constant dense<0.000000e+00> : vector<8xf32>
    %50 = vector.multi_reduction <add>, %49, %cst_27 [1] : vector<8x16xf32> to vector<8xf32>
    %51 = vector.shape_cast %50 : vector<8xf32> to vector<8x1xf32>
    %52 = tpu.reciprocal %51 {approx = true} : vector<8x1xf32> -> vector<8x1xf32>
    %53 = vector.broadcast %52 : vector<8x1xf32> to vector<8x16xf32>
    %54 = arith.mulf %49, %53 : vector<8x16xf32>
    %55 = arith.truncf %54 : vector<8x16xf32> to vector<8x16xbf16>
    %cst_28 = arith.constant dense<0.000000e+00> : vector<8x8xf32>
    %56 = tpu.matmul %55, %38, %cst_28 {dimension_numbers = #tpu.dot_dimension_numbers<[1], [0], [0], [1], [0, 0, 1, 1], [], []>} : vector<8x16xbf16>, vector<16x8xbf16>, vector<8x8xf32> -> vector<8x8xf32>
    %57 = vector.extract_strided_slice %13 {offsets = [0, 16], sizes = [8, 8], strides = [1, 1]} : vector<8x32xbf16> to vector<8x8xbf16>
    %58 = vector.extract_strided_slice %14 {offsets = [0, 16], sizes = [16, 8], strides = [1, 1]} : vector<16x32xbf16> to vector<16x8xbf16>
    %59 = vector.extract_strided_slice %4 {offsets = [0, 16], sizes = [16, 8], strides = [1, 1]} : vector<16x32xbf16> to vector<16x8xbf16>
    %cst_29 = arith.constant dense<0.000000e+00> : vector<8x16xf32>
    %60 = tpu.matmul %57, %58, %cst_29 {dimension_numbers = #tpu.dot_dimension_numbers<[1], [1], [0], [0], [0, 0, 1, 0], [], []>} : vector<8x8xbf16>, vector<16x8xbf16>, vector<8x16xf32> -> vector<8x16xf32>
    %61 = vector.broadcast %6 : vector<1x16xf32> to vector<8x16xf32>
    %62 = arith.addf %60, %61 : vector<8x16xf32>
    %c0_30 = arith.constant 0 : index
    %c2 = arith.constant 2 : index
    %c0_31 = arith.constant 0 : index
    %c0_32 = arith.constant 0 : index
    %63 = vector.load %arg7[%c0_30, %c2, %c0_31, %c0_32] : memref<1x4x8x16xf32, #tpu.memory_space<vmem>>, vector<1x1x8x16xf32>
    %64 = vector.shape_cast %63 : vector<1x1x8x16xf32> to vector<8x16xf32>
    %65 = vector.shape_cast %62 : vector<8x16xf32> to vector<1x1x8x16xf32>
    tpu.vector_store %arg7[%c0_30, %c2, %c0_31, %c0_32], %65 {strides = array<i32>} : memref<1x4x8x16xf32, #tpu.memory_space<vmem>>, vector<1x1x8x16xf32>,
    %cst_33 = arith.constant dense<0xFF800000> : vector<8xf32>
    %66 = vector.multi_reduction <maximumf>, %62, %cst_33 [1] : vector<8x16xf32> to vector<8xf32>
    %67 = vector.shape_cast %66 : vector<8xf32> to vector<8x1xf32>
    %68 = vector.broadcast %67 : vector<8x1xf32> to vector<8x16xf32>
    %69 = arith.subf %62, %68 : vector<8x16xf32>
    %70 = math.exp %69 : vector<8x16xf32>
    %cst_34 = arith.constant dense<0.000000e+00> : vector<8xf32>
    %71 = vector.multi_reduction <add>, %70, %cst_34 [1] : vector<8x16xf32> to vector<8xf32>
    %72 = vector.shape_cast %71 : vector<8xf32> to vector<8x1xf32>
    %73 = tpu.reciprocal %72 {approx = true} : vector<8x1xf32> -> vector<8x1xf32>
    %74 = vector.broadcast %73 : vector<8x1xf32> to vector<8x16xf32>
    %75 = arith.mulf %70, %74 : vector<8x16xf32>
    %76 = arith.truncf %75 : vector<8x16xf32> to vector<8x16xbf16>
    %cst_35 = arith.constant dense<0.000000e+00> : vector<8x8xf32>
    %77 = tpu.matmul %76, %59, %cst_35 {dimension_numbers = #tpu.dot_dimension_numbers<[1], [0], [0], [1], [0, 0, 1, 1], [], []>} : vector<8x16xbf16>, vector<16x8xbf16>, vector<8x8xf32> -> vector<8x8xf32>
    %78 = vector.extract_strided_slice %13 {offsets = [0, 24], sizes = [8, 8], strides = [1, 1]} : vector<8x32xbf16> to vector<8x8xbf16>
    %79 = vector.extract_strided_slice %14 {offsets = [0, 24], sizes = [16, 8], strides = [1, 1]} : vector<16x32xbf16> to vector<16x8xbf16>
    %80 = vector.extract_strided_slice %4 {offsets = [0, 24], sizes = [16, 8], strides = [1, 1]} : vector<16x32xbf16> to vector<16x8xbf16>
    %cst_36 = arith.constant dense<0.000000e+00> : vector<8x16xf32>
    %81 = tpu.matmul %78, %79, %cst_36 {dimension_numbers = #tpu.dot_dimension_numbers<[1], [1], [0], [0], [0, 0, 1, 0], [], []>} : vector<8x8xbf16>, vector<16x8xbf16>, vector<8x16xf32> -> vector<8x16xf32>
    %82 = vector.broadcast %6 : vector<1x16xf32> to vector<8x16xf32>
    %83 = arith.addf %81, %82 : vector<8x16xf32>
    %c0_37 = arith.constant 0 : index
    %c3 = arith.constant 3 : index
    %c0_38 = arith.constant 0 : index
    %c0_39 = arith.constant 0 : index
    %84 = vector.load %arg7[%c0_37, %c3, %c0_38, %c0_39] : memref<1x4x8x16xf32, #tpu.memory_space<vmem>>, vector<1x1x8x16xf32>
    %85 = vector.shape_cast %84 : vector<1x1x8x16xf32> to vector<8x16xf32>
    %86 = vector.shape_cast %83 : vector<8x16xf32> to vector<1x1x8x16xf32>
    tpu.vector_store %arg7[%c0_37, %c3, %c0_38, %c0_39], %86 {strides = array<i32>} : memref<1x4x8x16xf32, #tpu.memory_space<vmem>>, vector<1x1x8x16xf32>,
    %cst_40 = arith.constant dense<0xFF800000> : vector<8xf32>
    %87 = vector.multi_reduction <maximumf>, %83, %cst_40 [1] : vector<8x16xf32> to vector<8xf32>
    %88 = vector.shape_cast %87 : vector<8xf32> to vector<8x1xf32>
    %89 = vector.broadcast %88 : vector<8x1xf32> to vector<8x16xf32>
    %90 = arith.subf %83, %89 : vector<8x16xf32>
    %91 = math.exp %90 : vector<8x16xf32>
    %cst_41 = arith.constant dense<0.000000e+00> : vector<8xf32>
    %92 = vector.multi_reduction <add>, %91, %cst_41 [1] : vector<8x16xf32> to vector<8xf32>
    %93 = vector.shape_cast %92 : vector<8xf32> to vector<8x1xf32>
    %94 = tpu.reciprocal %93 {approx = true} : vector<8x1xf32> -> vector<8x1xf32>
    %95 = vector.broadcast %94 : vector<8x1xf32> to vector<8x16xf32>
    %96 = arith.mulf %91, %95 : vector<8x16xf32>
    %97 = arith.truncf %96 : vector<8x16xf32> to vector<8x16xbf16>
    %cst_42 = arith.constant dense<0.000000e+00> : vector<8x8xf32>
    %98 = tpu.matmul %97, %80, %cst_42 {dimension_numbers = #tpu.dot_dimension_numbers<[1], [0], [0], [1], [0, 0, 1, 1], [], []>} : vector<8x16xbf16>, vector<16x8xbf16>, vector<8x8xf32> -> vector<8x8xf32>
    %99 = tpu.concatenate %35, %56, %77, %98 in 1 : vector<8x8xf32>, vector<8x8xf32>, vector<8x8xf32>, vector<8x8xf32> -> vector<8x32xf32>
    %100 = arith.addf %99, %1 : vector<8x32xf32>
    %c0_43 = arith.constant 0 : index
    %c0_44 = arith.constant 0 : index
    %c0_45 = arith.constant 0 : index
    %101 = vector.load %arg6[%c0_43, %c0_44, %c0_45] : memref<1x8x32xf32, #tpu.memory_space<vmem>>, vector<1x8x32xf32>
    %102 = vector.shape_cast %101 : vector<1x8x32xf32> to vector<8x32xf32>
    %103 = vector.shape_cast %100 : vector<8x32xf32> to vector<1x8x32xf32>
    tpu.vector_store %arg6[%c0_43, %c0_44, %c0_45], %103 {strides = array<i32>} : memref<1x8x32xf32, #tpu.memory_space<vmem>>, vector<1x8x32xf32>,
    return
  }
  func.func @transform_0(%arg0: i32) -> (i32, i32, i32) {
    %c0_i32 = arith.constant 0 : i32
    %c0_i32_0 = arith.constant 0 : i32
    %c0_i32_1 = arith.constant 0 : i32
    return %arg0, %c0_i32, %c0_i32_0 : i32, i32, i32
  }
  func.func @transform_1(%arg0: i32) -> (i32, i32, i32) {
    %c0_i32 = arith.constant 0 : i32
    %c0_i32_0 = arith.constant 0 : i32
    %c0_i32_1 = arith.constant 0 : i32
    return %arg0, %c0_i32, %c0_i32_0 : i32, i32, i32
  }
  func.func @transform_2(%arg0: i32) -> (i32, i32, i32) {
    %c0_i32 = arith.constant 0 : i32
    %c0_i32_0 = arith.constant 0 : i32
    %c0_i32_1 = arith.constant 0 : i32
    return %arg0, %c0_i32, %c0_i32_0 : i32, i32, i32
  }
  func.func @transform_3(%arg0: i32) -> (i32, i32) {
    %c0_i32 = arith.constant 0 : i32
    %c0_i32_0 = arith.constant 0 : i32
    %c0_i32_1 = arith.constant 0 : i32
    return %c0_i32, %c0_i32_0 : i32, i32
  }
  func.func @transform_4(%arg0: i32) -> (i32, i32) {
    %c0_i32 = arith.constant 0 : i32
    %c0_i32_0 = arith.constant 0 : i32
    %c0_i32_1 = arith.constant 0 : i32
    return %c0_i32, %c0_i32_0 : i32, i32
  }
  func.func @transform_5(%arg0: i32) -> (i32, i32, i32) {
    %c0_i32 = arith.constant 0 : i32
    %c0_i32_0 = arith.constant 0 : i32
    %c0_i32_1 = arith.constant 0 : i32
    return %arg0, %c0_i32, %c0_i32_0 : i32, i32, i32
  }
  func.func @transform_6(%arg0: i32) -> (i32, i32, i32, i32) {
    %c0_i32 = arith.constant 0 : i32
    %c0_i32_0 = arith.constant 0 : i32
    %c0_i32_1 = arith.constant 0 : i32
    %c0_i32_2 = arith.constant 0 : i32
    return %arg0, %c0_i32, %c0_i32_0, %c0_i32_1 : i32, i32, i32, i32
  }
}

</mosaic_0001>

<llo_original>
// kernel: tpu_custom_call.1
$region0: #{tpu_custom_call.1}
  #allocation0 [shape = 'u32[]', space=smem, size = 0x4, offset = 0x4, fixed_abs, tag = 'smem constant byte address 0x4 - core index']
  #allocation1 [shape = 'u32[144,128]{1,0:T(1,128)}', space=vmem, size = 0x12000, scoped, tag = 'internal scratch']
  %s0 = inlined_call_operand.hbm [shape: f32[2,8,32], index: 0, kind: input, shape index: {}]
  %s1 = inlined_call_operand.hbm [shape: bf16[2,16,32], index: 1, kind: input, shape index: {}]
  %s2 = inlined_call_operand.vmem [shape: f32[2,1,16], index: 2, kind: input, shape index: {}]
  %s3 = inlined_call_operand.hbm [shape: bf16[32,32], index: 3, kind: input, shape index: {}]
  %s4 = inlined_call_operand.hbm [shape: bf16[32,32], index: 4, kind: input, shape index: {}]
  %s5 = inlined_call_operand.hbm [shape: f32[2,8,32], index: 5, kind: output, shape index: {0}]
  %s6 = inlined_call_operand.hbm [shape: f32[2,4,8,16], index: 6, kind: output, shape index: {1}]
  %7 = xla_tuple %s5, %s6
  %s8 = sld [smem:[#allocation0]]
  $region77: #{tpu_custom_call.1} parent=0
    _
  %s10 = ssub.s32 1, %s8
  %s11 = scalar_select 0, %s10, %s8
  $region1: #{tpu_custom_call.1} parent=0
    #allocation2 [shape = 'u8[8192]{0}', space=vmem, size = 0x2000, scoped, tag = 'input window, operand 0']
    #allocation3 [shape = 's32[2]{0}', space=sflag, size = 0x8, scoped, tag = 'scoped memory for tpu_custom_call.1']
    #allocation4 [shape = 's32[2]{0}', space=sflag, size = 0x8, scoped, tag = 'scoped memory for tpu_custom_call.1']
    #allocation5 [shape = 'u8[8192]{0}', space=vmem, size = 0x2000, scoped, tag = 'input window, operand 1']
    #allocation6 [shape = 's32[2]{0}', space=sflag, size = 0x8, scoped, tag = 'scoped memory for tpu_custom_call.1']
    #allocation7 [shape = 'u8[8192]{0}', space=vmem, size = 0x2000, scoped, tag = 'input window, operand 3, single buffered']
    #allocation8 [shape = 'u8[8192]{0}', space=vmem, size = 0x2000, scoped, tag = 'input window, operand 4, single buffered']
    #allocation9 [shape = 's32[1]{0}', space=sflag, size = 0x4, scoped, tag = 'scoped memory for tpu_custom_call.1']
    #allocation10 [shape = 'u8[8192]{0}', space=vmem, size = 0x2000, scoped, tag = 'output window, operand 0']
    #allocation11 [shape = 'u8[32768]{0}', space=vmem, size = 0x8000, scoped, tag = 'output window, operand 1']
    #allocation12 [shape = 's32[2]{0}', space=sflag, size = 0x8, scoped, tag = 'scoped memory for tpu_custom_call.1']
    %12 = vsyncpa [#allocation3], 0
    %s13 = scalar_lea.sflag [#allocation3], 1
    %14 = vsyncpa %s13, 0
    %15 = vsyncpa [#allocation6], 0
    %s16 = scalar_lea.sflag [#allocation6], 1
    %17 = vsyncpa %s16, 0
    %18 = vsyncpa [#allocation9], 0
    %19 = vsyncpa [#allocation4], 0
    %s20 = scalar_lea.sflag [#allocation4], 1
    %21 = vsyncpa %s20, 0
    %22 = vsyncpa [#allocation12], 0
    %s23 = scalar_lea.sflag [#allocation12], 1
    %24 = vsyncpa %s23, 0
    loop: start=0, step=1, limit=4
    $region2: #{tpu_custom_call.1} parent=1 // loop_pre_header
      _
    $region3: #{tpu_custom_call.1} parent=1 // loop_header
      %s26 = sphi 0, %s30
      %p27 = scmp.ge.s32.totalorder %s26, 4
      %s36 = sphi 0, %s38
      %s39 = sphi 0, %s36
      %s40 = sphi 0, %s39
      %s56 = sphi 0, %s40
      %s62 = sphi 0, %s64
      %s65 = sphi 0, %s62
      %s66 = sphi 0, %s65
      %s82 = sphi 0, %s66
      %s88 = sphi 0, %s90
      %s91 = sphi 0, %s88
      %s92 = sphi 0, %s91
      %s108 = sphi 0, %s92
      %s112 = sphi 0, %s112
      %s114 = sphi 0, %s112
      %s115 = sphi 0, %s114
      %s129 = sphi 0, %s115
      %s133 = sphi 0, %s133
      %s135 = sphi 0, %s133
      %s136 = sphi 0, %s135
      %s150 = sphi 0, %s136
      %s156 = sphi 0, %s158
      %s159 = sphi 0, %s156
      %s160 = sphi 0, %s159
      %s176 = sphi 0, %s160
      %s182 = sphi 0, %s184
      %s185 = sphi 0, %s182
      %s186 = sphi 0, %s185
      %s202 = sphi 0, %s186
    $region4: #{tpu_custom_call.1} parent=1 // loop_header_branch
      %29 = sbr.rel (%p27) target = $region8
    $region5: #{tpu_custom_call.1} parent=1 // loop_body
      %s31 = ssub.s32 %s26, 1
      %s32 = ssub.s32 %s26, 2
      %s33 = sadd.s32 %s26, 1
      %s34 = ssub.s32 %s26, %s33
      %p35 = scmp.eq.s32.totalorder %s34, 0
      %s37 = sadd.s32 %s36, 1
      %s38 = scalar_select %p35, %s36, %s37
      %p41 = pneg %p35
      %p42 = scmp.eq.s32.totalorder %s26, 1
      %p43 = por %p41, %p42
      %p44 = scmp.ne.s32.totalorder %s36, %s39
      %p45 = scmp.eq.s32.totalorder %s26, 0
      %p46 = por %p44, %p45
      %p47 = scmp.ne.s32.totalorder %s36, %s39
      %p48 = scmp.eq.s32.totalorder %s31, 1
      %p49 = por %p47, %p48
      %p50 = scmp.ne.s32.totalorder %s39, %s40
      %p51 = scmp.eq.s32.totalorder %s31, 0
      %p52 = por %p50, %p51
      %p53 = scmp.ne.s32.totalorder %s39, %s40
      %p54 = scmp.eq.s32.totalorder %s32, 1
      %p55 = por %p53, %p54
      %p57 = scmp.ne.s32.totalorder %s40, %s56
      %p58 = scmp.eq.s32.totalorder %s32, 0
      %p59 = por %p57, %p58
      %s60 = ssub.s32 %s26, %s33
      %p61 = scmp.eq.s32.totalorder %s60, 0
      %s63 = sadd.s32 %s62, 1
      %s64 = scalar_select %p61, %s62, %s63
      %p67 = pneg %p61
      %p68 = scmp.eq.s32.totalorder %s26, 1
      %p69 = por %p67, %p68
      %p70 = scmp.ne.s32.totalorder %s62, %s65
      %p71 = scmp.eq.s32.totalorder %s26, 0
      %p72 = por %p70, %p71
      %p73 = scmp.ne.s32.totalorder %s62, %s65
      %p74 = scmp.eq.s32.totalorder %s31, 1
      %p75 = por %p73, %p74
      %p76 = scmp.ne.s32.totalorder %s65, %s66
      %p77 = scmp.eq.s32.totalorder %s31, 0
      %p78 = por %p76, %p77
      %p79 = scmp.ne.s32.totalorder %s65, %s66
      %p80 = scmp.eq.s32.totalorder %s32, 1
      %p81 = por %p79, %p80
      %p83 = scmp.ne.s32.totalorder %s66, %s82
      %p84 = scmp.eq.s32.totalorder %s32, 0
      %p85 = por %p83, %p84
      %s86 = ssub.s32 %s26, %s33
      %p87 = scmp.eq.s32.totalorder %s86, 0
      %s89 = sadd.s32 %s88, 1
      %s90 = scalar_select %p87, %s88, %s89
      %p93 = pneg %p87
      %p94 = scmp.eq.s32.totalorder %s26, 1
      %p95 = por %p93, %p94
      %p96 = scmp.ne.s32.totalorder %s88, %s91
      %p97 = scmp.eq.s32.totalorder %s26, 0
      %p98 = por %p96, %p97
      %p99 = scmp.ne.s32.totalorder %s88, %s91
      %p100 = scmp.eq.s32.totalorder %s31, 1
      %p101 = por %p99, %p100
      %p102 = scmp.ne.s32.totalorder %s91, %s92
      %p103 = scmp.eq.s32.totalorder %s31, 0
      %p104 = por %p102, %p103
      %p105 = scmp.ne.s32.totalorder %s91, %s92
      %p106 = scmp.eq.s32.totalorder %s32, 1
      %p107 = por %p105, %p106
      %p109 = scmp.ne.s32.totalorder %s92, %s108
      %p110 = scmp.eq.s32.totalorder %s32, 0
      %p111 = por %p109, %p110
      %s113 = sadd.s32 %s112, 1
      %p116 = scmp.eq.s32.totalorder %s26, 1
      %p117 = scmp.ne.s32.totalorder %s112, %s114
      %p118 = scmp.eq.s32.totalorder %s26, 0
      %p119 = por %p117, %p118
      %p120 = scmp.ne.s32.totalorder %s112, %s114
      %p121 = scmp.eq.s32.totalorder %s31, 1
      %p122 = por %p120, %p121
      %p123 = scmp.ne.s32.totalorder %s114, %s115
      %p124 = scmp.eq.s32.totalorder %s31, 0
      %p125 = por %p123, %p124
      %p126 = scmp.ne.s32.totalorder %s114, %s115
      %p127 = scmp.eq.s32.totalorder %s32, 1
      %p128 = por %p126, %p127
      %p130 = scmp.ne.s32.totalorder %s115, %s129
      %p131 = scmp.eq.s32.totalorder %s32, 0
      %p132 = por %p130, %p131
      %s134 = sadd.s32 %s133, 1
      %p137 = scmp.eq.s32.totalorder %s26, 1
      %p138 = scmp.ne.s32.totalorder %s133, %s135
      %p139 = scmp.eq.s32.totalorder %s26, 0
      %p140 = por %p138, %p139
      %p141 = scmp.ne.s32.totalorder %s133, %s135
      %p142 = scmp.eq.s32.totalorder %s31, 1
      %p143 = por %p141, %p142
      %p144 = scmp.ne.s32.totalorder %s135, %s136
      %p145 = scmp.eq.s32.totalorder %s31, 0
      %p146 = por %p144, %p145
      %p147 = scmp.ne.s32.totalorder %s135, %s136
      %p148 = scmp.eq.s32.totalorder %s32, 1
      %p149 = por %p147, %p148
      %p151 = scmp.ne.s32.totalorder %s136, %s150
      %p152 = scmp.eq.s32.totalorder %s32, 0
      %p153 = por %p151, %p152
      %s154 = ssub.s32 %s26, %s33
      %p155 = scmp.eq.s32.totalorder %s154, 0
      %s157 = sadd.s32 %s156, 1
      %s158 = scalar_select %p155, %s156, %s157
      %p161 = pneg %p155
      %p162 = scmp.eq.s32.totalorder %s26, 1
      %p163 = por %p161, %p162
      %p164 = scmp.ne.s32.totalorder %s156, %s159
      %p165 = scmp.eq.s32.totalorder %s26, 0
      %p166 = por %p164, %p165
      %p167 = scmp.ne.s32.totalorder %s156, %s159
      %p168 = scmp.eq.s32.totalorder %s31, 1
      %p169 = por %p167, %p168
      %p170 = scmp.ne.s32.totalorder %s159, %s160
      %p171 = scmp.eq.s32.totalorder %s31, 0
      %p172 = por %p170, %p171
      %p173 = scmp.ne.s32.totalorder %s159, %s160
      %p174 = scmp.eq.s32.totalorder %s32, 1
      %p175 = por %p173, %p174
      %p177 = scmp.ne.s32.totalorder %s160, %s176
      %p178 = scmp.eq.s32.totalorder %s32, 0
      %p179 = por %p177, %p178
      %s180 = ssub.s32 %s26, %s33
      %p181 = scmp.eq.s32.totalorder %s180, 0
      %s183 = sadd.s32 %s182, 1
      %s184 = scalar_select %p181, %s182, %s183
      %p187 = pneg %p181
      %p188 = scmp.eq.s32.totalorder %s26, 1
      %p189 = por %p187, %p188
      %p190 = scmp.ne.s32.totalorder %s182, %s185
      %p191 = scmp.eq.s32.totalorder %s26, 0
      %p192 = por %p190, %p191
      %p193 = scmp.ne.s32.totalorder %s182, %s185
      %p194 = scmp.eq.s32.totalorder %s31, 1
      %p195 = por %p193, %p194
      %p196 = scmp.ne.s32.totalorder %s185, %s186
      %p197 = scmp.eq.s32.totalorder %s31, 0
      %p198 = por %p196, %p197
      %p199 = scmp.ne.s32.totalorder %s185, %s186
      %p200 = scmp.eq.s32.totalorder %s32, 1
      %p201 = por %p199, %p200
      %p203 = scmp.ne.s32.totalorder %s186, %s202
      %p204 = scmp.eq.s32.totalorder %s32, 0
      %p205 = por %p203, %p204
      %p206 = scmp.le.s32.totalorder 1, %s26
      %p207 = scmp.lt.s32.totalorder %s26, 3
      %p208 = pnand %p206, %p207
      %p209 = pneg %p208
      // Predicated region
      $region9: #{tpu_custom_call.1} parent=5 // pred_check
        _
      $region10: #{tpu_custom_call.1} parent=5 // pred_check_branch
        %211 = sbr.rel (%p208) target = $region12
      $region11: #{tpu_custom_call.1} parent=5 // pred_region
        %s212 = ssub.s32 %s26, 1
        // Predicated region
        $region13: #{tpu_custom_call.1} parent=11 // pred_check
          %p213 = pneg %p125
        $region14: #{tpu_custom_call.1} parent=11 // pred_check_branch
          %215 = sbr.rel (%p213) target = $region16
        $region15: #{tpu_custom_call.1} parent=11 // pred_region
          %s217 = ssub.s32 256, 256
          %218 = vsyncadd [#allocation6], %s217
          %s219 = sshll.u32 [#allocation7], 4
          %s220 = int_to_ptr.vmem [resolvable:$true] %s219
          %225 = dma.hbm_to_vmem [thread:$0]  %s3, 256, %s220, [#allocation6], 64, 64, 4
        $region16: #{tpu_custom_call.1} parent=11 // pred_fallthru
          _
        // Predicated region
        $region17: #{tpu_custom_call.1} parent=11 // pred_check
          %p226 = pneg %p146
        $region18: #{tpu_custom_call.1} parent=11 // pred_check_branch
          %228 = sbr.rel (%p226) target = $region20
        $region19: #{tpu_custom_call.1} parent=11 // pred_region
          %s230 = ssub.s32 256, 256
          %231 = vsyncadd [#allocation9], %s230
          %s232 = sshll.u32 [#allocation8], 4
          %s233 = int_to_ptr.vmem [resolvable:$true] %s232
          %238 = dma.hbm_to_vmem [thread:$0]  %s4, 256, %s233, [#allocation9], 64, 64, 4
        $region20: #{tpu_custom_call.1} parent=11 // pred_fallthru
          _
      $region12: #{tpu_custom_call.1} parent=5 // pred_fallthru
        _
      %p239 = scmp.lt.s32.totalorder %s26, 2
      // Predicated region
      $region21: #{tpu_custom_call.1} parent=5 // pred_check
        %p240 = pneg %p239
      $region22: #{tpu_custom_call.1} parent=5 // pred_check_branch
        %242 = sbr.rel (%p240) target = $region24
      $region23: #{tpu_custom_call.1} parent=5 // pred_region
        // Predicated region
        $region25: #{tpu_custom_call.1} parent=23 // pred_check
          %p243 = pneg %p46
        $region26: #{tpu_custom_call.1} parent=23 // pred_check_branch
          %245 = sbr.rel (%p243) target = $region28
        $region27: #{tpu_custom_call.1} parent=23 // pred_region
          %s246 = sand.u32 %s36, 1
          %s247 = scalar_lea.sflag [#allocation3], %s246
          %s248 = sand.u32 %s36, 1
          %s249 = smul.addr %s248, 8
          %s250 = scalar_lea.vmem [#allocation2], %s249
          %s252 = ssub.s32 128, 128
          %253 = vsyncadd %s247, %s252
          %s254 = smul.addr %s26, 128
          %s255 = scalar_lea.hbm %s0, %s254
          %s257 = sshll.u32 %s250, 4
          %s258 = int_to_ptr.vmem [resolvable:$true] %s257
          %260 = dma.hbm_to_vmem [thread:$0]  %s255, 128, %s258, %s247
        $region28: #{tpu_custom_call.1} parent=23 // pred_fallthru
          _
        // Predicated region
        $region29: #{tpu_custom_call.1} parent=23 // pred_check
          %p261 = pneg %p72
        $region30: #{tpu_custom_call.1} parent=23 // pred_check_branch
          %263 = sbr.rel (%p261) target = $region32
        $region31: #{tpu_custom_call.1} parent=23 // pred_region
          %s264 = sand.u32 %s26, 1
          %s265 = scalar_lea.sflag [#allocation6], %s264
          %s266 = sand.u32 %s62, 1
          %s267 = smul.addr %s266, 8
          %s268 = scalar_lea.vmem [#allocation5], %s267
          %s270 = ssub.s32 128, 128
          %271 = vsyncadd %s265, %s270
          %s272 = smul.addr %s26, 2
          %s273 = smul.addr %s272, 64
          %s274 = scalar_lea.hbm %s1, %s273
          %s275 = sshll.u32 %s268, 4
          %s276 = int_to_ptr.vmem [resolvable:$true] %s275
          %281 = dma.hbm_to_vmem [thread:$0]  %s274, 128, %s276, %s265, 64, 64, 4
        $region32: #{tpu_custom_call.1} parent=23 // pred_fallthru
          _
        // Predicated region
        $region33: #{tpu_custom_call.1} parent=23 // pred_check
          %p282 = pneg %p98
        $region34: #{tpu_custom_call.1} parent=23 // pred_check_branch
          %284 = sbr.rel (%p282) target = $region36
        $region35: #{tpu_custom_call.1} parent=23 // pred_region
          %p285 = scmp.lt.s32.totalorder %s26, 1
          %s286 = scalar_select %p285, %s26, 1
          %s287 = scalar_lea.vmem %s2, %s286
        $region36: #{tpu_custom_call.1} parent=23 // pred_fallthru
          _
      $region24: #{tpu_custom_call.1} parent=5 // pred_fallthru
        _
      %p288 = scmp.le.s32.totalorder 1, %s26
      %p289 = scmp.lt.s32.totalorder %s26, 3
      %p290 = pnand %p288, %p289
      %p291 = pneg %p290
      // Predicated region
      $region37: #{tpu_custom_call.1} parent=5 // pred_check
        _
      $region38: #{tpu_custom_call.1} parent=5 // pred_check_branch
        %293 = sbr.rel (%p290) target = $region40
      $region39: #{tpu_custom_call.1} parent=5 // pred_region
        %s294 = ssub.s32 %s26, 1
        %s295 = sand.u32 %s39, 1
        %s296 = scalar_lea.sflag [#allocation3], %s295
        %s297 = sand.u32 %s39, 1
        %s298 = smul.addr %s297, 8
        %s299 = scalar_lea.vmem [#allocation2], %s298
        // Predicated region
        $region41: #{tpu_custom_call.1} parent=39 // pred_check
          %p300 = pneg %p52
        $region42: #{tpu_custom_call.1} parent=39 // pred_check_branch
          %302 = sbr.rel (%p300) target = $region44
        $region43: #{tpu_custom_call.1} parent=39 // pred_region
          %303 = dma.done %s296, 128
        $region44: #{tpu_custom_call.1} parent=39 // pred_fallthru
          _
        %s304 = sand.u32 %s31, 1
        %s305 = scalar_lea.sflag [#allocation6], %s304
        %s306 = sand.u32 %s65, 1
        %s307 = smul.addr %s306, 8
        %s308 = scalar_lea.vmem [#allocation5], %s307
        // Predicated region
        $region45: #{tpu_custom_call.1} parent=39 // pred_check
          %p309 = pneg %p78
        $region46: #{tpu_custom_call.1} parent=39 // pred_check_branch
          %311 = sbr.rel (%p309) target = $region48
        $region47: #{tpu_custom_call.1} parent=39 // pred_region
          %312 = dma.done %s305, 128
        $region48: #{tpu_custom_call.1} parent=39 // pred_fallthru
          _
        // Predicated region
        $region49: #{tpu_custom_call.1} parent=39 // pred_check
          %p313 = pneg %p125
        $region50: #{tpu_custom_call.1} parent=39 // pred_check_branch
          %315 = sbr.rel (%p313) target = $region52
        $region51: #{tpu_custom_call.1} parent=39 // pred_region
          %316 = dma.done [#allocation6], 256
        $region52: #{tpu_custom_call.1} parent=39 // pred_fallthru
          _
        // Predicated region
        $region53: #{tpu_custom_call.1} parent=39 // pred_check
          %p317 = pneg %p146
        $region54: #{tpu_custom_call.1} parent=39 // pred_check_branch
          %319 = sbr.rel (%p317) target = $region56
        $region55: #{tpu_custom_call.1} parent=39 // pred_region
          %320 = dma.done [#allocation9], 256
        $region56: #{tpu_custom_call.1} parent=39 // pred_fallthru
          _
        %s321 = sand.u32 %s39, 1
        %s322 = scalar_lea.sflag [#allocation3], %s321
        %s323 = sand.u32 %s39, 1
        %s324 = smul.addr %s323, 8
        %s325 = scalar_lea.vmem [#allocation2], %s324
        %p326 = pneg %p52
        %p327 = pneg %p49
        %s328 = sand.u32 %s31, 1
        %s329 = scalar_lea.sflag [#allocation6], %s328
        %s330 = sand.u32 %s65, 1
        %s331 = smul.addr %s330, 8
        %s332 = scalar_lea.vmem [#allocation5], %s331
        %p333 = pneg %p78
        %p334 = pneg %p75
        %p335 = scmp.lt.s32.totalorder %s31, 1
        %s336 = scalar_select %p335, %s31, 1
        %s337 = scalar_lea.vmem %s2, %s336
        %p338 = pneg %p104
        %p339 = pneg %p101
        %p340 = pneg %p125
        %p341 = pneg %p122
        %p342 = pneg %p146
        %p343 = pneg %p143
        %p344 = pneg %p172
        %p345 = pneg %p169
        %s346 = sand.u32 %s159, 1
        %s347 = scalar_lea.sflag [#allocation4], %s346
        %s348 = sand.u32 %s159, 1
        %s349 = smul.addr %s348, 8
        %s350 = scalar_lea.vmem [#allocation10], %s349
        %p351 = pneg %p198
        %p352 = pneg %p195
        %s353 = sand.u32 %s185, 1
        %s354 = scalar_lea.sflag [#allocation12], %s353
        %s355 = sand.u32 %s185, 1
        %s356 = smul.addr %s355, 32
        %s357 = scalar_lea.vmem [#allocation11], %s356
        %p358 = scmp.lt.s32.totalorder %s31, 1
        %s359 = scalar_select %p358, %s31, 1
        %s360 = scalar_lea.vmem %s2, %s359
        %v362 = vld [vmem:[%s299] sm:$0xff]
        %v363 = vpack.c.bf16 %v362, %v362
        %v364 = vld [vmem:[%s308] sm:$0xf]
        %v365 = vld [vmem:[%s308 + $0x4] sm:$0xf]
        %v366 = vld [vmem:[%s360] sm:$0x1]
        %v367 = vld [vmem:[#allocation7] sm:$0xf]
        %v368 = vld [vmem:[#allocation7 + $0x4] sm:$0xf]
        %v369 = vld [vmem:[#allocation7 + $0x8] sm:$0xf]
        %v370 = vld [vmem:[#allocation7 + $0xc] sm:$0xf]
        %v375 = vunpack.c.l.b16 %v367
        %v376 = vunpack.c.l.b16 %v368
        %v377 = vunpack.c.l.b16 %v369
        %v378 = vunpack.c.l.b16 %v370
        %v379 = vpack.c.b16 %v376, %v375
        %v380 = vpack.c.b16 %v378, %v377
        %vm383 = vcmask 261120
        %v385 = vsel %vm383, %v363, 0
        %387 = vmatprep.subr.bf16.mxu0 0
        %388 = vmatpush1.bf16.msra.mxu0 0
        %389 = vmatprep.subr.bf16.mxu0 0
        %390 = vmatpush1.bf16.msra.mxu0 0
        %391 = vmatprep.subr.bf16.mxu0 0
        %392 = vmatpush1.bf16.msra.mxu0 0
        %393 = vmatprep.subr.bf16.mxu0 0
        %394 = vmatpush1.bf16.msra.mxu0 0
        %395 = vmatprep.subr.bf16.mxu0 0
        %396 = vmatpush1.bf16.msra.mxu0 0
        %397 = vmatprep.subr.bf16.mxu0 0
        %398 = vmatpush1.bf16.msra.mxu0 0
        %399 = vmatprep.subr.bf16.mxu0 0
        %400 = vmatpush1.bf16.msra.mxu0 %v380
        %401 = vmatprep.subr.bf16.mxu0 0
        %402 = vmatpush1.bf16.msra.mxu0 %v379
        %403 = vmatprep.subr.bf16.mxu0 0
        %404 = vmatpush2.bf16.msra.mxu0 0
        %405 = vmatprep.subr.bf16.mxu0 0
        %406 = vmatpush2.bf16.msra.mxu0 0
        %407 = vmatprep.subr.bf16.mxu0 0
        %408 = vmatpush2.bf16.msra.mxu0 0
        %409 = vmatprep.subr.bf16.mxu0 0
        %410 = vmatpush2.bf16.msra.mxu0 0
        %411 = vmatprep.subr.bf16.mxu0 0
        %412 = vmatpush2.bf16.msra.mxu0 0
        %413 = vmatprep.subr.bf16.mxu0 0
        %414 = vmatpush2.bf16.msra.mxu0 0
        %415 = vmatprep.subr.bf16.mxu0 0
        %416 = vmatpush2.bf16.msra.mxu0 0
        %417 = vmatprep.subr.bf16.mxu0 0
        %418 = vmatpush2.bf16.msra.mxu0 0
        %419 = vmatprep.mubr.bf16.mxu0 0
        %420 = vmatmul.mubr.bf16.gmra.mxu0 %v385
        %v421 = vpop.f32.mrf.mxu0
        %v422 = vadd.f32 0.0, %v421
        %v423 = vpop.f32.mrf.mxu0
        %v424 = vpop.f32.mrf.mxu0
        %v425 = vpop.f32.mrf.mxu0
        %426 = vdwg.mxu0
        %v427 = vld [vmem:[#allocation8] sm:$0xf]
        %v428 = vld [vmem:[#allocation8 + $0x4] sm:$0xf]
        %v429 = vld [vmem:[#allocation8 + $0x8] sm:$0xf]
        %v430 = vld [vmem:[#allocation8 + $0xc] sm:$0xf]
        %v433 = vunpack.c.l.b16 %v364
        %v434 = vunpack.c.l.b16 %v365
        %v435 = vpack.c.b16 %v434, %v433
        %v440 = vunpack.c.l.b16 %v427
        %v441 = vunpack.c.l.b16 %v428
        %v442 = vunpack.c.l.b16 %v429
        %v443 = vunpack.c.l.b16 %v430
        %v444 = vpack.c.b16 %v441, %v440
        %v445 = vpack.c.b16 %v443, %v442
        %v449 = vsel %vm383, %v435, 0
        %451 = vmatprep.subr.bf16.mxu0 0
        %452 = vmatpush1.bf16.msra.mxu0 0
        %453 = vmatprep.subr.bf16.mxu0 0
        %454 = vmatpush1.bf16.msra.mxu0 0
        %455 = vmatprep.subr.bf16.mxu0 0
        %456 = vmatpush1.bf16.msra.mxu0 0
        %457 = vmatprep.subr.bf16.mxu0 0
        %458 = vmatpush1.bf16.msra.mxu0 0
        %459 = vmatprep.subr.bf16.mxu0 0
        %460 = vmatpush1.bf16.msra.mxu0 0
        %461 = vmatprep.subr.bf16.mxu0 0
        %462 = vmatpush1.bf16.msra.mxu0 0
        %463 = vmatprep.subr.bf16.mxu0 0
        %464 = vmatpush1.bf16.msra.mxu0 %v445
        %465 = vmatprep.subr.bf16.mxu0 0
        %466 = vmatpush1.bf16.msra.mxu0 %v444
        %467 = vmatprep.subr.bf16.mxu0 0
        %468 = vmatpush2.bf16.msra.mxu0 0
        %469 = vmatprep.subr.bf16.mxu0 0
        %470 = vmatpush2.bf16.msra.mxu0 0
        %471 = vmatprep.subr.bf16.mxu0 0
        %472 = vmatpush2.bf16.msra.mxu0 0
        %473 = vmatprep.subr.bf16.mxu0 0
        %474 = vmatpush2.bf16.msra.mxu0 0
        %475 = vmatprep.subr.bf16.mxu0 0
        %476 = vmatpush2.bf16.msra.mxu0 0
        %477 = vmatprep.subr.bf16.mxu0 0
        %478 = vmatpush2.bf16.msra.mxu0 0
        %479 = vmatprep.subr.bf16.mxu0 0
        %480 = vmatpush2.bf16.msra.mxu0 0
        %481 = vmatprep.subr.bf16.mxu0 0
        %482 = vmatpush2.bf16.msra.mxu0 0
        %483 = vmatprep.mubr.bf16.mxu0 0
        %484 = vmatmul.mubr.bf16.gmra.mxu0 %v449
        %v485 = vpop.f32.mrf.mxu0
        %v486 = vadd.f32 0.0, %v485
        %v487 = vpop.f32.mrf.mxu0
        %v488 = vpop.f32.mrf.mxu0
        %v489 = vadd.f32 0.0, %v488
        %v490 = vpop.f32.mrf.mxu0
        %491 = vdwg.mxu0
        %v492 = vmul.f32 %v422, 0.35355338
        %v493 = vpack.c.bf16 %v492, %v492
        %v494 = vpack.c.bf16 %v489, %v486
        %v496 = vlaneseq
        %v497 = vshrl.u32 %v496, 7
        %v498 = vsub.s32 0, %v497
        %v499 = vrot.slane %v366, %v498
        %vm501 = vcmask 64512
        %v503 = vsel %vm501, %v493, 0
        %v506 = vsel %vm501, %v494, 0
        %508 = vmatprep.subr.bf16.mxu0 0
        %509 = vmatpush1.bf16.xpose.msra.mxu0 0
        %510 = vmatprep.subr.bf16.mxu0 0
        %511 = vmatpush1.bf16.xpose.msra.mxu0 0
        %512 = vmatprep.subr.bf16.mxu0 0
        %513 = vmatpush1.bf16.xpose.msra.mxu0 0
        %514 = vmatprep.subr.bf16.mxu0 0
        %515 = vmatpush1.bf16.xpose.msra.mxu0 0
        %516 = vmatprep.subr.bf16.mxu0 0
        %517 = vmatpush1.bf16.xpose.msra.mxu0 0
        %518 = vmatprep.subr.bf16.mxu0 0
        %519 = vmatpush1.bf16.xpose.msra.mxu0 0
        %520 = vmatprep.subr.bf16.mxu0 0
        %521 = vmatpush1.bf16.xpose.msra.mxu0 0
        %522 = vmatprep.subr.bf16.mxu0 0
        %523 = vmatpush1.bf16.xpose.msra.mxu0 %v506
        %524 = vmatprep.subr.bf16.mxu0 0
        %525 = vmatpush2.bf16.xpose.msra.mxu0 0
        %526 = vmatprep.subr.bf16.mxu0 0
        %527 = vmatpush2.bf16.xpose.msra.mxu0 0
        %528 = vmatprep.subr.bf16.mxu0 0
        %529 = vmatpush2.bf16.xpose.msra.mxu0 0
        %530 = vmatprep.subr.bf16.mxu0 0
        %531 = vmatpush2.bf16.xpose.msra.mxu0 0
        %532 = vmatprep.subr.bf16.mxu0 0
        %533 = vmatpush2.bf16.xpose.msra.mxu0 0
        %534 = vmatprep.subr.bf16.mxu0 0
        %535 = vmatpush2.bf16.xpose.msra.mxu0 0
        %536 = vmatprep.subr.bf16.mxu0 0
        %537 = vmatpush2.bf16.xpose.msra.mxu0 0
        %538 = vmatprep.subr.bf16.mxu0 0
        %539 = vmatpush2.bf16.xpose.msra.mxu0 0
        %540 = vmatprep.mubr.bf16.mxu0 0
        %541 = vmatmul.mubr.bf16.gmra.mxu0 %v503
        %v542 = vpop.f32.mrf.mxu0
        %v543 = vadd.f32 %v499, %v542
        %v544 = vpop.f32.mrf.mxu0
        %v545 = vpop.f32.mrf.mxu0
        %v546 = vpop.f32.mrf.mxu0
        %547 = vdwg.mxu0
        %vm548 = vcmask 130048
        %549 = vst.msk [vmem:[%s357] sm:$0xff] %vm548, %v543
        %v550 = vsel %vm548, %v543, -inf
        %551 = vmax.xlane.f32.xlu0 %v550
        %v552 = vpop.xlane.xlu0 %551
        %v553 = vsub.f32 %v543, %v552
        %v554 = vmul.f32 %v553, 1.442695
        %v555 = vpow.pop %v554
        %v556 = vsel %vm548, %v555, 0.0
        %557 = vadd.xlane.f32.xlu0 %v556
        %v558 = vpop.xlane.xlu0 %557
        %v559 = vrcp.pop %v558
        %v560 = vmul.f32 %v555, %v559
        %v561 = vpack.c.bf16 %v560, %v560
        %v564 = vsel %vm548, %v561, 0
        %566 = vmatprep.subr.bf16.mxu0 0
        %567 = vmatpush1.bf16.msra.mxu0 0
        %568 = vmatprep.subr.bf16.mxu0 0
        %569 = vmatpush1.bf16.msra.mxu0 0
        %570 = vmatprep.subr.bf16.mxu0 0
        %571 = vmatpush1.bf16.msra.mxu0 0
        %572 = vmatprep.subr.bf16.mxu0 0
        %573 = vmatpush1.bf16.msra.mxu0 0
        %574 = vmatprep.subr.bf16.mxu0 0
        %575 = vmatpush1.bf16.msra.mxu0 0
        %576 = vmatprep.subr.bf16.mxu0 0
        %577 = vmatpush1.bf16.msra.mxu0 0
        %578 = vmatprep.subr.bf16.mxu0 0
        %579 = vmatpush1.bf16.msra.mxu0 0
        %580 = vmatprep.subr.bf16.mxu0 0
        %581 = vmatpush1.bf16.msra.mxu0 %v435
        %582 = vmatprep.subr.bf16.mxu0 0
        %583 = vmatpush2.bf16.msra.mxu0 0
        %584 = vmatprep.subr.bf16.mxu0 0
        %585 = vmatpush2.bf16.msra.mxu0 0
        %586 = vmatprep.subr.bf16.mxu0 0
        %587 = vmatpush2.bf16.msra.mxu0 0
        %588 = vmatprep.subr.bf16.mxu0 0
        %589 = vmatpush2.bf16.msra.mxu0 0
        %590 = vmatprep.subr.bf16.mxu0 0
        %591 = vmatpush2.bf16.msra.mxu0 0
        %592 = vmatprep.subr.bf16.mxu0 0
        %593 = vmatpush2.bf16.msra.mxu0 0
        %594 = vmatprep.subr.bf16.mxu0 0
        %595 = vmatpush2.bf16.msra.mxu0 0
        %596 = vmatprep.subr.bf16.mxu0 0
        %597 = vmatpush2.bf16.msra.mxu0 0
        %598 = vmatprep.mubr.bf16.mxu0 0
        %599 = vmatmul.mubr.bf16.gmra.mxu0 %v564
        %v600 = vpop.f32.mrf.mxu0
        %v601 = vadd.f32 0.0, %v600
        %v602 = vpop.f32.mrf.mxu0
        %v603 = vpop.f32.mrf.mxu0
        %v604 = vpop.f32.mrf.mxu0
        %605 = vdwg.mxu0
        %607 = vrot.lane.b32.xlu0 %v493, 120
        %v608 = vpop.permute.xlu0 %607
        %610 = vrot.lane.b32.xlu0 %v494, 120
        %v611 = vpop.permute.xlu0 %610
        %v613 = vsel %vm501, %v608, 0
        %v616 = vsel %vm501, %v611, 0
        %618 = vmatprep.subr.bf16.mxu0 0
        %619 = vmatpush1.bf16.xpose.msra.mxu0 0
        %620 = vmatprep.subr.bf16.mxu0 0
        %621 = vmatpush1.bf16.xpose.msra.mxu0 0
        %622 = vmatprep.subr.bf16.mxu0 0
        %623 = vmatpush1.bf16.xpose.msra.mxu0 0
        %624 = vmatprep.subr.bf16.mxu0 0
        %625 = vmatpush1.bf16.xpose.msra.mxu0 0
        %626 = vmatprep.subr.bf16.mxu0 0
        %627 = vmatpush1.bf16.xpose.msra.mxu0 0
        %628 = vmatprep.subr.bf16.mxu0 0
        %629 = vmatpush1.bf16.xpose.msra.mxu0 0
        %630 = vmatprep.subr.bf16.mxu0 0
        %631 = vmatpush1.bf16.xpose.msra.mxu0 0
        %632 = vmatprep.subr.bf16.mxu0 0
        %633 = vmatpush1.bf16.xpose.msra.mxu0 %v616
        %634 = vmatprep.subr.bf16.mxu0 0
        %635 = vmatpush2.bf16.xpose.msra.mxu0 0
        %636 = vmatprep.subr.bf16.mxu0 0
        %637 = vmatpush2.bf16.xpose.msra.mxu0 0
        %638 = vmatprep.subr.bf16.mxu0 0
        %639 = vmatpush2.bf16.xpose.msra.mxu0 0
        %640 = vmatprep.subr.bf16.mxu0 0
        %641 = vmatpush2.bf16.xpose.msra.mxu0 0
        %642 = vmatprep.subr.bf16.mxu0 0
        %643 = vmatpush2.bf16.xpose.msra.mxu0 0
        %644 = vmatprep.subr.bf16.mxu0 0
        %645 = vmatpush2.bf16.xpose.msra.mxu0 0
        %646 = vmatprep.subr.bf16.mxu0 0
        %647 = vmatpush2.bf16.xpose.msra.mxu0 0
        %648 = vmatprep.subr.bf16.mxu0 0
        %649 = vmatpush2.bf16.xpose.msra.mxu0 0
        %650 = vmatprep.mubr.bf16.mxu0 0
        %651 = vmatmul.mubr.bf16.gmra.mxu0 %v613
        %v652 = vpop.f32.mrf.mxu0
        %v653 = vadd.f32 %v499, %v652
        %v654 = vpop.f32.mrf.mxu0
        %v655 = vpop.f32.mrf.mxu0
        %v656 = vpop.f32.mrf.mxu0
        %657 = vdwg.mxu0
        %s658 = scalar_lea.vmem %s357, 8 [#allocation11]
        %659 = vst.msk [vmem:[%s658] sm:$0xff] %vm548, %v653
        %v660 = vsel %vm548, %v653, -inf
        %661 = vmax.xlane.f32.xlu0 %v660
        %v662 = vpop.xlane.xlu0 %661
        %v663 = vsub.f32 %v653, %v662
        %v664 = vmul.f32 %v663, 1.442695
        %v665 = vpow.pop %v664
        %v666 = vsel %vm548, %v665, 0.0
        %667 = vadd.xlane.f32.xlu0 %v666
        %v668 = vpop.xlane.xlu0 %667
        %v669 = vrcp.pop %v668
        %v670 = vmul.f32 %v665, %v669
        %v671 = vpack.c.bf16 %v670, %v670
        %672 = vrot.lane.b32.xlu0 %v435, 120
        %v673 = vpop.permute.xlu0 %672
        %v676 = vsel %vm548, %v671, 0
        %678 = vmatprep.subr.bf16.mxu0 0
        %679 = vmatpush1.bf16.msra.mxu0 0
        %680 = vmatprep.subr.bf16.mxu0 0
        %681 = vmatpush1.bf16.msra.mxu0 0
        %682 = vmatprep.subr.bf16.mxu0 0
        %683 = vmatpush1.bf16.msra.mxu0 0
        %684 = vmatprep.subr.bf16.mxu0 0
        %685 = vmatpush1.bf16.msra.mxu0 0
        %686 = vmatprep.subr.bf16.mxu0 0
        %687 = vmatpush1.bf16.msra.mxu0 0
        %688 = vmatprep.subr.bf16.mxu0 0
        %689 = vmatpush1.bf16.msra.mxu0 0
        %690 = vmatprep.subr.bf16.mxu0 0
        %691 = vmatpush1.bf16.msra.mxu0 0
        %692 = vmatprep.subr.bf16.mxu0 0
        %693 = vmatpush1.bf16.msra.mxu0 %v673
        %694 = vmatprep.subr.bf16.mxu0 0
        %695 = vmatpush2.bf16.msra.mxu0 0
        %696 = vmatprep.subr.bf16.mxu0 0
        %697 = vmatpush2.bf16.msra.mxu0 0
        %698 = vmatprep.subr.bf16.mxu0 0
        %699 = vmatpush2.bf16.msra.mxu0 0
        %700 = vmatprep.subr.bf16.mxu0 0
        %701 = vmatpush2.bf16.msra.mxu0 0
        %702 = vmatprep.subr.bf16.mxu0 0
        %703 = vmatpush2.bf16.msra.mxu0 0
        %704 = vmatprep.subr.bf16.mxu0 0
        %705 = vmatpush2.bf16.msra.mxu0 0
        %706 = vmatprep.subr.bf16.mxu0 0
        %707 = vmatpush2.bf16.msra.mxu0 0
        %708 = vmatprep.subr.bf16.mxu0 0
        %709 = vmatpush2.bf16.msra.mxu0 0
        %710 = vmatprep.mubr.bf16.mxu0 0
        %711 = vmatmul.mubr.bf16.gmra.mxu0 %v676
        %v712 = vpop.f32.mrf.mxu0
        %v713 = vadd.f32 0.0, %v712
        %v714 = vpop.f32.mrf.mxu0
        %v715 = vpop.f32.mrf.mxu0
        %v716 = vpop.f32.mrf.mxu0
        %717 = vdwg.mxu0
        %718 = vrot.lane.b32.xlu0 %v493, 112
        %v719 = vpop.permute.xlu0 %718
        %720 = vrot.lane.b32.xlu0 %v494, 112
        %v721 = vpop.permute.xlu0 %720
        %v723 = vsel %vm501, %v719, 0
        %v726 = vsel %vm501, %v721, 0
        %728 = vmatprep.subr.bf16.mxu0 0
        %729 = vmatpush1.bf16.xpose.msra.mxu0 0
        %730 = vmatprep.subr.bf16.mxu0 0
        %731 = vmatpush1.bf16.xpose.msra.mxu0 0
        %732 = vmatprep.subr.bf16.mxu0 0
        %733 = vmatpush1.bf16.xpose.msra.mxu0 0
        %734 = vmatprep.subr.bf16.mxu0 0
        %735 = vmatpush1.bf16.xpose.msra.mxu0 0
        %736 = vmatprep.subr.bf16.mxu0 0
        %737 = vmatpush1.bf16.xpose.msra.mxu0 0
        %738 = vmatprep.subr.bf16.mxu0 0
        %739 = vmatpush1.bf16.xpose.msra.mxu0 0
        %740 = vmatprep.subr.bf16.mxu0 0
        %741 = vmatpush1.bf16.xpose.msra.mxu0 0
        %742 = vmatprep.subr.bf16.mxu0 0
        %743 = vmatpush1.bf16.xpose.msra.mxu0 %v726
        %744 = vmatprep.subr.bf16.mxu0 0
        %745 = vmatpush2.bf16.xpose.msra.mxu0 0
        %746 = vmatprep.subr.bf16.mxu0 0
        %747 = vmatpush2.bf16.xpose.msra.mxu0 0
        %748 = vmatprep.subr.bf16.mxu0 0
        %749 = vmatpush2.bf16.xpose.msra.mxu0 0
        %750 = vmatprep.subr.bf16.mxu0 0
        %751 = vmatpush2.bf16.xpose.msra.mxu0 0
        %752 = vmatprep.subr.bf16.mxu0 0
        %753 = vmatpush2.bf16.xpose.msra.mxu0 0
        %754 = vmatprep.subr.bf16.mxu0 0
        %755 = vmatpush2.bf16.xpose.msra.mxu0 0
        %756 = vmatprep.subr.bf16.mxu0 0
        %757 = vmatpush2.bf16.xpose.msra.mxu0 0
        %758 = vmatprep.subr.bf16.mxu0 0
        %759 = vmatpush2.bf16.xpose.msra.mxu0 0
        %760 = vmatprep.mubr.bf16.mxu0 0
        %761 = vmatmul.mubr.bf16.gmra.mxu0 %v723
        %v762 = vpop.f32.mrf.mxu0
        %v763 = vadd.f32 %v499, %v762
        %v764 = vpop.f32.mrf.mxu0
        %v765 = vpop.f32.mrf.mxu0
        %v766 = vpop.f32.mrf.mxu0
        %767 = vdwg.mxu0
        %s768 = scalar_lea.vmem %s357, 16 [#allocation11]
        %769 = vst.msk [vmem:[%s768] sm:$0xff] %vm548, %v763
        %v770 = vsel %vm548, %v763, -inf
        %771 = vmax.xlane.f32.xlu0 %v770
        %v772 = vpop.xlane.xlu0 %771
        %v773 = vsub.f32 %v763, %v772
        %v774 = vmul.f32 %v773, 1.442695
        %v775 = vpow.pop %v774
        %v776 = vsel %vm548, %v775, 0.0
        %777 = vadd.xlane.f32.xlu0 %v776
        %v778 = vpop.xlane.xlu0 %777
        %v779 = vrcp.pop %v778
        %v780 = vmul.f32 %v775, %v779
        %v781 = vpack.c.bf16 %v780, %v780
        %782 = vrot.lane.b32.xlu0 %v435, 112
        %v783 = vpop.permute.xlu0 %782
        %v786 = vsel %vm548, %v781, 0
        %788 = vmatprep.subr.bf16.mxu0 0
        %789 = vmatpush1.bf16.msra.mxu0 0
        %790 = vmatprep.subr.bf16.mxu0 0
        %791 = vmatpush1.bf16.msra.mxu0 0
        %792 = vmatprep.subr.bf16.mxu0 0
        %793 = vmatpush1.bf16.msra.mxu0 0
        %794 = vmatprep.subr.bf16.mxu0 0
        %795 = vmatpush1.bf16.msra.mxu0 0
        %796 = vmatprep.subr.bf16.mxu0 0
        %797 = vmatpush1.bf16.msra.mxu0 0
        %798 = vmatprep.subr.bf16.mxu0 0
        %799 = vmatpush1.bf16.msra.mxu0 0
        %800 = vmatprep.subr.bf16.mxu0 0
        %801 = vmatpush1.bf16.msra.mxu0 0
        %802 = vmatprep.subr.bf16.mxu0 0
        %803 = vmatpush1.bf16.msra.mxu0 %v783
        %804 = vmatprep.subr.bf16.mxu0 0
        %805 = vmatpush2.bf16.msra.mxu0 0
        %806 = vmatprep.subr.bf16.mxu0 0
        %807 = vmatpush2.bf16.msra.mxu0 0
        %808 = vmatprep.subr.bf16.mxu0 0
        %809 = vmatpush2.bf16.msra.mxu0 0
        %810 = vmatprep.subr.bf16.mxu0 0
        %811 = vmatpush2.bf16.msra.mxu0 0
        %812 = vmatprep.subr.bf16.mxu0 0
        %813 = vmatpush2.bf16.msra.mxu0 0
        %814 = vmatprep.subr.bf16.mxu0 0
        %815 = vmatpush2.bf16.msra.mxu0 0
        %816 = vmatprep.subr.bf16.mxu0 0
        %817 = vmatpush2.bf16.msra.mxu0 0
        %818 = vmatprep.subr.bf16.mxu0 0
        %819 = vmatpush2.bf16.msra.mxu0 0
        %820 = vmatprep.mubr.bf16.mxu0 0
        %821 = vmatmul.mubr.bf16.gmra.mxu0 %v786
        %v822 = vpop.f32.mrf.mxu0
        %v823 = vadd.f32 0.0, %v822
        %v824 = vpop.f32.mrf.mxu0
        %v825 = vpop.f32.mrf.mxu0
        %v826 = vpop.f32.mrf.mxu0
        %827 = vdwg.mxu0
        %828 = vrot.lane.b32.xlu0 %v493, 104
        %v829 = vpop.permute.xlu0 %828
        %830 = vrot.lane.b32.xlu0 %v494, 104
        %v831 = vpop.permute.xlu0 %830
        %v833 = vsel %vm501, %v829, 0
        %v836 = vsel %vm501, %v831, 0
        %838 = vmatprep.subr.bf16.mxu0 0
        %839 = vmatpush1.bf16.xpose.msra.mxu0 0
        %840 = vmatprep.subr.bf16.mxu0 0
        %841 = vmatpush1.bf16.xpose.msra.mxu0 0
        %842 = vmatprep.subr.bf16.mxu0 0
        %843 = vmatpush1.bf16.xpose.msra.mxu0 0
        %844 = vmatprep.subr.bf16.mxu0 0
        %845 = vmatpush1.bf16.xpose.msra.mxu0 0
        %846 = vmatprep.subr.bf16.mxu0 0
        %847 = vmatpush1.bf16.xpose.msra.mxu0 0
        %848 = vmatprep.subr.bf16.mxu0 0
        %849 = vmatpush1.bf16.xpose.msra.mxu0 0
        %850 = vmatprep.subr.bf16.mxu0 0
        %851 = vmatpush1.bf16.xpose.msra.mxu0 0
        %852 = vmatprep.subr.bf16.mxu0 0
        %853 = vmatpush1.bf16.xpose.msra.mxu0 %v836
        %854 = vmatprep.subr.bf16.mxu0 0
        %855 = vmatpush2.bf16.xpose.msra.mxu0 0
        %856 = vmatprep.subr.bf16.mxu0 0
        %857 = vmatpush2.bf16.xpose.msra.mxu0 0
        %858 = vmatprep.subr.bf16.mxu0 0
        %859 = vmatpush2.bf16.xpose.msra.mxu0 0
        %860 = vmatprep.subr.bf16.mxu0 0
        %861 = vmatpush2.bf16.xpose.msra.mxu0 0
        %862 = vmatprep.subr.bf16.mxu0 0
        %863 = vmatpush2.bf16.xpose.msra.mxu0 0
        %864 = vmatprep.subr.bf16.mxu0 0
        %865 = vmatpush2.bf16.xpose.msra.mxu0 0
        %866 = vmatprep.subr.bf16.mxu0 0
        %867 = vmatpush2.bf16.xpose.msra.mxu0 0
        %868 = vmatprep.subr.bf16.mxu0 0
        %869 = vmatpush2.bf16.xpose.msra.mxu0 0
        %870 = vmatprep.mubr.bf16.mxu0 0
        %871 = vmatmul.mubr.bf16.gmra.mxu0 %v833
        %v872 = vpop.f32.mrf.mxu0
        %v873 = vadd.f32 %v499, %v872
        %v874 = vpop.f32.mrf.mxu0
        %v875 = vpop.f32.mrf.mxu0
        %v876 = vpop.f32.mrf.mxu0
        %877 = vdwg.mxu0
        %s878 = scalar_lea.vmem %s357, 24 [#allocation11]
        %879 = vst.msk [vmem:[%s878] sm:$0xff] %vm548, %v873
        %v880 = vsel %vm548, %v873, -inf
        %881 = vmax.xlane.f32.xlu0 %v880
        %v882 = vpop.xlane.xlu0 %881
        %v883 = vsub.f32 %v873, %v882
        %v884 = vmul.f32 %v883, 1.442695
        %v885 = vpow.pop %v884
        %v886 = vsel %vm548, %v885, 0.0
        %887 = vadd.xlane.f32.xlu0 %v886
        %v888 = vpop.xlane.xlu0 %887
        %v889 = vrcp.pop %v888
        %v890 = vmul.f32 %v885, %v889
        %v891 = vpack.c.bf16 %v890, %v890
        %892 = vrot.lane.b32.xlu0 %v435, 104
        %v893 = vpop.permute.xlu0 %892
        %v896 = vsel %vm548, %v891, 0
        %898 = vmatprep.subr.bf16.mxu0 0
        %899 = vmatpush1.bf16.msra.mxu0 0
        %900 = vmatprep.subr.bf16.mxu0 0
        %901 = vmatpush1.bf16.msra.mxu0 0
        %902 = vmatprep.subr.bf16.mxu0 0
        %903 = vmatpush1.bf16.msra.mxu0 0
        %904 = vmatprep.subr.bf16.mxu0 0
        %905 = vmatpush1.bf16.msra.mxu0 0
        %906 = vmatprep.subr.bf16.mxu0 0
        %907 = vmatpush1.bf16.msra.mxu0 0
        %908 = vmatprep.subr.bf16.mxu0 0
        %909 = vmatpush1.bf16.msra.mxu0 0
        %910 = vmatprep.subr.bf16.mxu0 0
        %911 = vmatpush1.bf16.msra.mxu0 0
        %912 = vmatprep.subr.bf16.mxu0 0
        %913 = vmatpush1.bf16.msra.mxu0 %v893
        %914 = vmatprep.subr.bf16.mxu0 0
        %915 = vmatpush2.bf16.msra.mxu0 0
        %916 = vmatprep.subr.bf16.mxu0 0
        %917 = vmatpush2.bf16.msra.mxu0 0
        %918 = vmatprep.subr.bf16.mxu0 0
        %919 = vmatpush2.bf16.msra.mxu0 0
        %920 = vmatprep.subr.bf16.mxu0 0
        %921 = vmatpush2.bf16.msra.mxu0 0
        %922 = vmatprep.subr.bf16.mxu0 0
        %923 = vmatpush2.bf16.msra.mxu0 0
        %924 = vmatprep.subr.bf16.mxu0 0
        %925 = vmatpush2.bf16.msra.mxu0 0
        %926 = vmatprep.subr.bf16.mxu0 0
        %927 = vmatpush2.bf16.msra.mxu0 0
        %928 = vmatprep.subr.bf16.mxu0 0
        %929 = vmatpush2.bf16.msra.mxu0 0
        %930 = vmatprep.mubr.bf16.mxu0 0
        %931 = vmatmul.mubr.bf16.gmra.mxu0 %v896
        %v932 = vpop.f32.mrf.mxu0
        %v933 = vadd.f32 0.0, %v932
        %v934 = vpop.f32.mrf.mxu0
        %v935 = vpop.f32.mrf.mxu0
        %v936 = vpop.f32.mrf.mxu0
        %937 = vdwg.mxu0
        %939 = vrot.lane.b32.xlu0 %v713, 8
        %v940 = vpop.permute.xlu0 %939
        %943 = vrot.lane.b32.xlu0 %v823, 16
        %v944 = vpop.permute.xlu0 %943
        %947 = vrot.lane.b32.xlu0 %v933, 24
        %v948 = vpop.permute.xlu0 %947
        %v950 = vsel %vm501, %v601, %v940
        %v951 = vsel %vm548, %v950, %v944
        %vm952 = vcmask 195584
        %v953 = vsel %vm952, %v951, %v948
        %v954 = vadd.f32 %v953, %v362
        %955 = vst.msk [vmem:[%s350] sm:$0xff] %vm383, %v954
        %s956 = sand.u32 %s159, 1
        %s957 = scalar_lea.sflag [#allocation4], %s956
        %s958 = sand.u32 %s159, 1
        %s959 = smul.addr %s958, 8
        %s960 = scalar_lea.vmem [#allocation10], %s959
        %s961 = sand.u32 %s185, 1
        %s962 = scalar_lea.sflag [#allocation12], %s961
        %s963 = sand.u32 %s185, 1
        %s964 = smul.addr %s963, 32
        %s965 = scalar_lea.vmem [#allocation11], %s964
        // Predicated region
        $region57: #{tpu_custom_call.1} parent=39 // pred_check
          %p966 = pneg %p169
        $region58: #{tpu_custom_call.1} parent=39 // pred_check_branch
          %968 = sbr.rel (%p966) target = $region60
        $region59: #{tpu_custom_call.1} parent=39 // pred_region
          %s970 = ssub.s32 128, 128
          %971 = vsyncadd %s957, %s970
          %s972 = smul.addr %s31, 128
          %s973 = scalar_lea.hbm %s5, %s972
          %s975 = sshll.u32 %s960, 4
          %s976 = int_to_ptr.vmem [resolvable:$true] %s975
          %978 = dma.vmem_to_hbm [thread:$0]  %s976, 128, %s973, %s957
        $region60: #{tpu_custom_call.1} parent=39 // pred_fallthru
          _
        // Predicated region
        $region61: #{tpu_custom_call.1} parent=39 // pred_check
          %p979 = pneg %p195
        $region62: #{tpu_custom_call.1} parent=39 // pred_check_branch
          %981 = sbr.rel (%p979) target = $region64
        $region63: #{tpu_custom_call.1} parent=39 // pred_region
          %s983 = ssub.s32 512, 512
          %984 = vsyncadd %s962, %s983
          %s985 = smul.addr %s31, 4
          %s986 = smul.addr %s985, 128
          %s987 = scalar_lea.hbm %s6, %s986
          %s988 = sshll.u32 %s965, 4
          %s989 = int_to_ptr.vmem [resolvable:$true] %s988
          %994 = dma.vmem_to_hbm [thread:$0]  %s989, 512, %s987, %s962, 128, 128, 8
        $region64: #{tpu_custom_call.1} parent=39 // pred_fallthru
          _
      $region40: #{tpu_custom_call.1} parent=5 // pred_fallthru
        _
      %p995 = scmp.le.s32.totalorder 2, %s26
      // Predicated region
      $region65: #{tpu_custom_call.1} parent=5 // pred_check
        %p996 = pneg %p995
      $region66: #{tpu_custom_call.1} parent=5 // pred_check_branch
        %998 = sbr.rel (%p996) target = $region68
      $region67: #{tpu_custom_call.1} parent=5 // pred_region
        %s999 = ssub.s32 %s26, 2
        // Predicated region
        $region69: #{tpu_custom_call.1} parent=67 // pred_check
          %p1000 = pneg %p175
        $region70: #{tpu_custom_call.1} parent=67 // pred_check_branch
          %1002 = sbr.rel (%p1000) target = $region72
        $region71: #{tpu_custom_call.1} parent=67 // pred_region
          %s1003 = sand.u32 %s160, 1
          %s1004 = scalar_lea.sflag [#allocation4], %s1003
          %s1005 = sand.u32 %s160, 1
          %s1006 = smul.addr %s1005, 8
          %s1007 = scalar_lea.vmem [#allocation10], %s1006
          %1008 = dma.done %s1004, 128
        $region72: #{tpu_custom_call.1} parent=67 // pred_fallthru
          _
        // Predicated region
        $region73: #{tpu_custom_call.1} parent=67 // pred_check
          %p1009 = pneg %p201
        $region74: #{tpu_custom_call.1} parent=67 // pred_check_branch
          %1011 = sbr.rel (%p1009) target = $region76
        $region75: #{tpu_custom_call.1} parent=67 // pred_region
          %s1012 = sand.u32 %s186, 1
          %s1013 = scalar_lea.sflag [#allocation12], %s1012
          %s1014 = sand.u32 %s186, 1
          %s1015 = smul.addr %s1014, 32
          %s1016 = scalar_lea.vmem [#allocation11], %s1015
          %1017 = dma.done %s1013, 512
        $region76: #{tpu_custom_call.1} parent=67 // pred_fallthru
          _
      $region68: #{tpu_custom_call.1} parent=5 // pred_fallthru
        _
    $region6: #{tpu_custom_call.1} parent=1 // loop_footer
      %s30 = sadd.s32 1, %s26
    $region7: #{tpu_custom_call.1} parent=1 // loop_footer_branch
      %25 = sbr.rel target = $region3
    $region8: #{tpu_custom_call.1} parent=1 // loop_exit
      _
    %1018 = vsyncpa [#allocation3], 1
    %s1019 = scalar_lea.sflag [#allocation3], 1
    %1020 = vsyncpa %s1019, 1
    %1021 = vsyncpa [#allocation6], 1
    %s1022 = scalar_lea.sflag [#allocation6], 1
    %1023 = vsyncpa %s1022, 1
    %1024 = vsyncpa [#allocation9], 1
    %1025 = vsyncpa [#allocation4], 1
    %s1026 = scalar_lea.sflag [#allocation4], 1
    %1027 = vsyncpa %s1026, 1
    %1028 = vsyncpa [#allocation12], 1
    %s1029 = scalar_lea.sflag [#allocation12], 1
    %1030 = vsyncpa %s1029, 1

</llo_original>
